<compile_context>
chip_gen: v7x
topology: tpu7x:2x2x1
jax: 0.10.0
libtpu: 0.0.40
codegen_flags: <defaults>
</compile_context>

<pallas_src>
import functools

import jax
import jax.numpy as jnp
from jax.experimental import pallas as pl
from jax.experimental.pallas import tpu as pltpu


LANE = 128  # TPU lane width; all channel dims are zero-padded to this.


# ------------------------------- fused kernel ------------------------------ #

def _fused_generator_kernel(*refs, n_layers, dilations, has_ds, kernel_size, L):
    """Whole Generator forward in one kernel.

    refs = (x, [w1, b1, w2, b2, (wd, bd)?] * n_layers, lin_w, lin_b, out)
      x     : (B*L, 128) f32   channel-padded, batch-flattened input noise
      w1/w2 : (k*128, 128) bf16  tap-stacked causal conv weights
      b1/b2 : (1, 128) f32
      wd    : (128, 128) bf16    1x1 downsample conv (only when n_in != n_out)
      lin_w : (128, 128) bf16, lin_b : (1, 128) f32
      out   : (B*L, 128) f32
    """
    x_ref = refs[0]
    o_ref = refs[-1]
    wrefs = refs[1:-1]
    M = x_ref.shape[0]  # B * L

    # Hoisted causal-mask helper: row index within each length-L sequence.
    row_mod = jax.lax.broadcasted_iota(jnp.int32, (M, LANE), 0) % L

    def shifted(h, s):
        # Causal delay by s timesteps on the flattened (B*L, C) operand.
        if s == 0:
            return h
        rolled = pltpu.roll(h, shift=s, axis=0)            # XLU sublane rotate
        # Rows with (t within their sequence) < s are the causally
        # zero-padded positions -- and the only positions where the roll
        # wrapped across a batch boundary -- so mask them to zero.
        return jnp.where(row_mod >= s, rolled, 0.0)

    def causal_conv(h, w_ref, b_ref, d):
        # Wide-K tap fusion: concatenate the k shifted copies along the lane
        # axis and do ONE bf16 matmul with K = k*128 (f32 accumulation).
        parts = [shifted(h, j * d) for j in range(kernel_size)]
        lhs = jnp.concatenate(parts, axis=1) if kernel_size > 1 else parts[0]
        acc = jnp.dot(lhs.astype(jnp.bfloat16), w_ref[...],
                      preferred_element_type=jnp.float32)
        return acc + b_ref[...]

    h = x_ref[...]  # f32, already padded & flattened by the wrapper
    idx = 0
    for i in range(n_layers):
        d = dilations[i]
        w1, b1, w2, b2 = wrefs[idx:idx + 4]
        idx += 4
        y = jnp.maximum(causal_conv(h, w1, b1, d), 0.0)
        # TODO(synk): nn.Dropout2d is identity at inference; training-mode
        # channel dropout is not implemented.
        y = jnp.maximum(causal_conv(y, w2, b2, d), 0.0)
        if has_ds[i]:
            wd, bd = wrefs[idx:idx + 2]
            idx += 2
            res = jnp.dot(h.astype(jnp.bfloat16), wd[...],
                          preferred_element_type=jnp.float32) + bd[...]
        else:
            res = h
        h = jnp.maximum(y + res, 0.0)

    lin_w, lin_b = wrefs[idx], wrefs[idx + 1]
    out = jnp.tanh(jnp.dot(h.astype(jnp.bfloat16), lin_w[...],
                           preferred_element_type=jnp.float32) + lin_b[...])
    # 2-D lane-dense unmasked store; (B, L, C) reshape + slice in the wrapper.
    o_ref[...] = out.astype(o_ref.dtype)


# ------------------------------ weight packing ------------------------------ #

def _pad_axis(a, axis, size):
    pad = size - a.shape[axis]
    if pad <= 0:
        return a
    widths = [(0, 0)] * a.ndim
    widths[axis] = (0, pad)
    return jnp.pad(a, widths)


def prepare_params(params):
    """One-time pad / tap-stack / bf16-cast of all weights (NOT per forward).

    Zero padding keeps the math unchanged: padded weight rows/cols and biases
    are zero, so padded channels stay exactly 0 through ReLU / residual / tanh
    and are sliced off after the kernel.
    """
    n_layers = len(params["blocks"])
    kernel_size = params["blocks"][0]["w1"].shape[0]
    dilations = tuple(2 ** i for i in range(n_layers))
    has_ds = []
    flat = []
    for blk in params["blocks"]:
        k = blk["w1"].shape[0]
        w1 = _pad_axis(_pad_axis(blk["w1"], 1, LANE), 2, LANE).reshape(k * LANE, LANE)
        w2 = _pad_axis(_pad_axis(blk["w2"], 1, LANE), 2, LANE).reshape(k * LANE, LANE)
        flat += [w1.astype(jnp.bfloat16),
                 _pad_axis(blk["b1"], 1, LANE).astype(jnp.float32),
                 w2.astype(jnp.bfloat16),
                 _pad_axis(blk["b2"], 1, LANE).astype(jnp.float32)]
        if "wd" in blk:
            wd = _pad_axis(_pad_axis(blk["wd"], 1, LANE), 2, LANE).reshape(LANE, LANE)
            flat += [wd.astype(jnp.bfloat16),
                     _pad_axis(blk["bd"], 1, LANE).astype(jnp.float32)]
            has_ds.append(True)
        else:
            has_ds.append(False)
    flat += [_pad_axis(_pad_axis(params["lin_w"], 0, LANE), 1, LANE).astype(jnp.bfloat16),
             _pad_axis(params["lin_b"], 1, LANE).astype(jnp.float32)]
    meta = dict(n_layers=n_layers, dilations=dilations, has_ds=tuple(has_ds),
                kernel_size=kernel_size, output_size=params["lin_w"].shape[-1])
    flat = tuple(jax.device_put(w) for w in flat)
    return flat, meta


# ------------------------------ pallas wrapper ------------------------------ #

def generator_forward(x, flat, *, meta):
    """x: (batch, seq_len, noise_size) -> (batch, seq_len, output_size)."""
    B, L, _ = x.shape
    output_size = meta["output_size"]

    # Per-call input prep only: flatten batch into the matmul M dim and pad
    # channels to the lane width (a few KiB).
    xp = _pad_axis(x.reshape(B * L, -1).astype(jnp.float32), 1, LANE)

    kern = functools.partial(_fused_generator_kernel,
                             n_layers=meta["n_layers"],
                             dilations=meta["dilations"],
                             has_ds=meta["has_ds"],
                             kernel_size=meta["kernel_size"],
                             L=L)

    # No grid: single invocation, all weights + activations resident in VMEM
    # (< 1 MiB total here).
    out2d = pl.pallas_call(
        kern,
        out_shape=jax.ShapeDtypeStruct((B * L, LANE), jnp.float32),
    )(xp, *flat)
    return out2d.reshape(B, L, LANE)[:, :, :output_size]


# ----------------------------- params & reference --------------------------- #

def init_params(key, noise_size, output_size, n_layers, n_channel, kernel_size):
    params = {"blocks": []}
    ch_in = noise_size
    for _ in range(n_layers):
        ch_out = n_channel
        key, k1, k2, k3, k4, k5, k6 = jax.random.split(key, 7)
        blk = {
            "w1": 0.3 * jax.random.normal(k1, (kernel_size, ch_in, ch_out), jnp.float32),
            "b1": 0.1 * jax.random.normal(k2, (1, ch_out), jnp.float32),
            "w2": 0.3 * jax.random.normal(k3, (kernel_size, ch_out, ch_out), jnp.float32),
            "b2": 0.1 * jax.random.normal(k4, (1, ch_out), jnp.float32),
        }
        if ch_in != ch_out:  # 1x1 downsample conv on the residual path
            blk["wd"] = 0.3 * jax.random.normal(k5, (1, ch_in, ch_out), jnp.float32)
            blk["bd"] = 0.1 * jax.random.normal(k6, (1, ch_out), jnp.float32)
        params["blocks"].append(blk)
        ch_in = ch_out
    key, k7, _ = jax.random.split(key, 3)
    params["lin_w"] = 0.01 * jax.random.normal(k7, (ch_in, output_size), jnp.float32)
    params["lin_b"] = jnp.zeros((1, output_size), jnp.float32)
    return params


def reference_forward(x, params):
    """Pure-JAX f32 reference of the same semantics (numerical check)."""
    def causal_conv(h, w, b, d):
        B, L, _ = h.shape
        out = jnp.zeros((B, L, w.shape[-1]), jnp.float32)
        for j in range(w.shape[0]):
            s = j * d
            xs = jnp.pad(h, ((0, 0), (s, 0), (0, 0)))[:, :L, :]
            out = out + jnp.einsum("blc,co->blo", xs, w[j])
        return out + b

    h = x
    for i, blk in enumerate(params["blocks"]):
        d = 2 ** i
        y = jax.nn.relu(causal_conv(h, blk["w1"], blk["b1"], d))
        y = jax.nn.relu(causal_conv(y, blk["w2"], blk["b2"], d))
        if "wd" in blk:
            res = jnp.einsum("blc,co->blo", h, blk["wd"][0]) + blk["bd"]
        else:
            res = h
        h = jax.nn.relu(y + res)
    return jnp.tanh(jnp.einsum("blc,co->blo", h, params["lin_w"]) + params["lin_b"])


# ------------------------------------ main ---------------------------------- #

if __name__ == "__main__":
    # Generator(noise_size=4, output_size=3, n_layers=2, n_channel=8, kernel_size=2)
    batch, seq_len = 2, 16
    noise_size, output_size = 4, 3
    n_layers, n_channel, kernel_size = 2, 8, 2

    key = jax.random.PRNGKey(0)
    key, kx = jax.random.split(key)
    x = jax.random.normal(kx, (batch, seq_len, noise_size), jnp.float32)

    params = init_params(key, noise_size, output_size, n_layers, n_channel,
                         kernel_size)

    # One-time weight pad / tap-stack / bf16 packing (outside the jitted fwd).
    flat, meta = prepare_params(params)
    flat = jax.block_until_ready(flat)

    fwd = jax.jit(functools.partial(generator_forward, meta=meta))
    out = jax.block_until_ready(fwd(x, flat))

    ref = reference_forward(x, params)
    assert out.shape == (batch, seq_len, output_size)
    # bf16 matmul operands (f32 accumulation) -> relaxed tolerance vs f32 ref.
    assert jnp.allclose(out, ref, atol=2e-2, rtol=0.0), (
        f"max abs err {jnp.max(jnp.abs(out - ref))}")

    print("KERNEL_OK")
</pallas_src>

<mosaic_0001>
module attributes {stable_mosaic.version = 11 : i64} {
  func.func @_fused_generator_kernel(%arg0: memref<32x128xf32, #tpu.memory_space<vmem>>, %arg1: memref<256x128xbf16, #tpu.memory_space<vmem>>, %arg2: memref<1x128xf32, #tpu.memory_space<vmem>>, %arg3: memref<256x128xbf16, #tpu.memory_space<vmem>>, %arg4: memref<1x128xf32, #tpu.memory_space<vmem>>, %arg5: memref<128x128xbf16, #tpu.memory_space<vmem>>, %arg6: memref<1x128xf32, #tpu.memory_space<vmem>>, %arg7: memref<256x128xbf16, #tpu.memory_space<vmem>>, %arg8: memref<1x128xf32, #tpu.memory_space<vmem>>, %arg9: memref<256x128xbf16, #tpu.memory_space<vmem>>, %arg10: memref<1x128xf32, #tpu.memory_space<vmem>>, %arg11: memref<128x128xbf16, #tpu.memory_space<vmem>>, %arg12: memref<1x128xf32, #tpu.memory_space<vmem>>, %arg13: memref<32x128xf32, #tpu.memory_space<vmem>>) attributes {dimension_semantics = [], scalar_prefetch = 0 : i64, scratch_operands = 0 : i64, tpu.core_type = #tpu.core_type<tc>} {
    %0 = tpu.iota {dimensions = array<i32: 0>} : vector<32x128xi32>
    %c16_i32 = arith.constant 16 : i32
    %c0_i32 = arith.constant 0 : i32
    %1 = arith.cmpi eq, %c16_i32, %c0_i32 : i32
    %c1_i32 = arith.constant 1 : i32
    %2 = arith.select %1, %c1_i32, %c16_i32 : i32
    %3 = vector.broadcast %2 : i32 to vector<32x128xi32>
    %4 = arith.remsi %0, %3 : vector<32x128xi32>
    %c0_i32_0 = arith.constant 0 : i32
    %5 = vector.broadcast %c0_i32_0 : i32 to vector<32x128xi32>
    %6 = arith.cmpi ne, %4, %5 : vector<32x128xi32>
    %c0_i32_1 = arith.constant 0 : i32
    %7 = vector.broadcast %c0_i32_1 : i32 to vector<32x128xi32>
    %8 = arith.cmpi slt, %4, %7 : vector<32x128xi32>
    %c0_i32_2 = arith.constant 0 : i32
    %9 = arith.cmpi slt, %2, %c0_i32_2 : i32
    %10 = vector.broadcast %9 : i1 to vector<32x128xi1>
    %11 = vector.broadcast %10 : vector<32x128xi1> to vector<32x128xi1>
    %12 = arith.xori %8, %11 : vector<32x128xi1>
    %13 = arith.andi %12, %6 : vector<32x128xi1>
    %14 = vector.broadcast %2 : i32 to vector<32x128xi32>
    %15 = arith.addi %4, %14 : vector<32x128xi32>
    %16 = arith.select %13, %15, %4 : vector<32x128xi1>, vector<32x128xi32>
    %c0 = arith.constant 0 : index
    %c0_3 = arith.constant 0 : index
    %17 = vector.load %arg0[%c0, %c0_3] : memref<32x128xf32, #tpu.memory_space<vmem>>, vector<32x128xf32>
    %c1_i32_4 = arith.constant 1 : i32
    %18 = tpu.dynamic_rotate %17 by %c1_i32_4 dim 0 : vector<32x128xf32>, i32 -> vector<32x128xf32>
    %c1_i32_5 = arith.constant 1 : i32
    %19 = vector.broadcast %c1_i32_5 : i32 to vector<32x128xi32>
    %20 = arith.cmpi sge, %16, %19 : vector<32x128xi32>
    %cst = arith.constant 0.000000e+00 : f32
    %21 = vector.broadcast %cst : f32 to vector<32x128xf32>
    %22 = arith.select %20, %18, %21 : vector<32x128xi1>, vector<32x128xf32>
    %23 = tpu.concatenate %17, %22 in 1 : vector<32x128xf32>, vector<32x128xf32> -> vector<32x256xf32>
    %24 = arith.truncf %23 : vector<32x256xf32> to vector<32x256xbf16>
    %c0_6 = arith.constant 0 : index
    %c0_7 = arith.constant 0 : index
    %25 = vector.load %arg1[%c0_6, %c0_7] : memref<256x128xbf16, #tpu.memory_space<vmem>>, vector<256x128xbf16>
    %cst_8 = arith.constant dense<0.000000e+00> : vector<32x128xf32>
    %26 = tpu.matmul %24, %25, %cst_8 {dimension_numbers = #tpu.dot_dimension_numbers<[1], [0], [0], [1], [0, 0, 1, 1], [], []>} : vector<32x256xbf16>, vector<256x128xbf16>, vector<32x128xf32> -> vector<32x128xf32>
    %c0_9 = arith.constant 0 : index
    %c0_10 = arith.constant 0 : index
    %27 = vector.load %arg2[%c0_9, %c0_10] : memref<1x128xf32, #tpu.memory_space<vmem>>, vector<1x128xf32>
    %28 = vector.broadcast %27 : vector<1x128xf32> to vector<32x128xf32>
    %29 = arith.addf %26, %28 : vector<32x128xf32>
    %cst_11 = arith.constant 0.000000e+00 : f32
    %30 = vector.broadcast %cst_11 : f32 to vector<32x128xf32>
    %31 = arith.maximumf %29, %30 : vector<32x128xf32>
    %c1_i32_12 = arith.constant 1 : i32
    %32 = tpu.dynamic_rotate %31 by %c1_i32_12 dim 0 : vector<32x128xf32>, i32 -> vector<32x128xf32>
    %c1_i32_13 = arith.constant 1 : i32
    %33 = vector.broadcast %c1_i32_13 : i32 to vector<32x128xi32>
    %34 = arith.cmpi sge, %16, %33 : vector<32x128xi32>
    %cst_14 = arith.constant 0.000000e+00 : f32
    %35 = vector.broadcast %cst_14 : f32 to vector<32x128xf32>
    %36 = arith.select %34, %32, %35 : vector<32x128xi1>, vector<32x128xf32>
    %37 = tpu.concatenate %31, %36 in 1 : vector<32x128xf32>, vector<32x128xf32> -> vector<32x256xf32>
    %38 = arith.truncf %37 : vector<32x256xf32> to vector<32x256xbf16>
    %c0_15 = arith.constant 0 : index
    %c0_16 = arith.constant 0 : index
    %39 = vector.load %arg3[%c0_15, %c0_16] : memref<256x128xbf16, #tpu.memory_space<vmem>>, vector<256x128xbf16>
    %cst_17 = arith.constant dense<0.000000e+00> : vector<32x128xf32>
    %40 = tpu.matmul %38, %39, %cst_17 {dimension_numbers = #tpu.dot_dimension_numbers<[1], [0], [0], [1], [0, 0, 1, 1], [], []>} : vector<32x256xbf16>, vector<256x128xbf16>, vector<32x128xf32> -> vector<32x128xf32>
    %c0_18 = arith.constant 0 : index
    %c0_19 = arith.constant 0 : index
    %41 = vector.load %arg4[%c0_18, %c0_19] : memref<1x128xf32, #tpu.memory_space<vmem>>, vector<1x128xf32>
    %42 = vector.broadcast %41 : vector<1x128xf32> to vector<32x128xf32>
    %43 = arith.addf %40, %42 : vector<32x128xf32>
    %cst_20 = arith.constant 0.000000e+00 : f32
    %44 = vector.broadcast %cst_20 : f32 to vector<32x128xf32>
    %45 = arith.maximumf %43, %44 : vector<32x128xf32>
    %46 = arith.truncf %17 : vector<32x128xf32> to vector<32x128xbf16>
    %c0_21 = arith.constant 0 : index
    %c0_22 = arith.constant 0 : index
    %47 = vector.load %arg5[%c0_21, %c0_22] : memref<128x128xbf16, #tpu.memory_space<vmem>>, vector<128x128xbf16>
    %cst_23 = arith.constant dense<0.000000e+00> : vector<32x128xf32>
    %48 = tpu.matmul %46, %47, %cst_23 {dimension_numbers = #tpu.dot_dimension_numbers<[1], [0], [0], [1], [0, 0, 1, 1], [], []>} : vector<32x128xbf16>, vector<128x128xbf16>, vector<32x128xf32> -> vector<32x128xf32>
    %c0_24 = arith.constant 0 : index
    %c0_25 = arith.constant 0 : index
    %49 = vector.load %arg6[%c0_24, %c0_25] : memref<1x128xf32, #tpu.memory_space<vmem>>, vector<1x128xf32>
    %50 = vector.broadcast %49 : vector<1x128xf32> to vector<32x128xf32>
    %51 = arith.addf %48, %50 : vector<32x128xf32>
    %52 = arith.addf %45, %51 : vector<32x128xf32>
    %cst_26 = arith.constant 0.000000e+00 : f32
    %53 = vector.broadcast %cst_26 : f32 to vector<32x128xf32>
    %54 = arith.maximumf %52, %53 : vector<32x128xf32>
    %c2_i32 = arith.constant 2 : i32
    %55 = tpu.dynamic_rotate %54 by %c2_i32 dim 0 : vector<32x128xf32>, i32 -> vector<32x128xf32>
    %c2_i32_27 = arith.constant 2 : i32
    %56 = vector.broadcast %c2_i32_27 : i32 to vector<32x128xi32>
    %57 = arith.cmpi sge, %16, %56 : vector<32x128xi32>
    %cst_28 = arith.constant 0.000000e+00 : f32
    %58 = vector.broadcast %cst_28 : f32 to vector<32x128xf32>
    %59 = arith.select %57, %55, %58 : vector<32x128xi1>, vector<32x128xf32>
    %60 = tpu.concatenate %54, %59 in 1 : vector<32x128xf32>, vector<32x128xf32> -> vector<32x256xf32>
    %61 = arith.truncf %60 : vector<32x256xf32> to vector<32x256xbf16>
    %c0_29 = arith.constant 0 : index
    %c0_30 = arith.constant 0 : index
    %62 = vector.load %arg7[%c0_29, %c0_30] : memref<256x128xbf16, #tpu.memory_space<vmem>>, vector<256x128xbf16>
    %cst_31 = arith.constant dense<0.000000e+00> : vector<32x128xf32>
    %63 = tpu.matmul %61, %62, %cst_31 {dimension_numbers = #tpu.dot_dimension_numbers<[1], [0], [0], [1], [0, 0, 1, 1], [], []>} : vector<32x256xbf16>, vector<256x128xbf16>, vector<32x128xf32> -> vector<32x128xf32>
    %c0_32 = arith.constant 0 : index
    %c0_33 = arith.constant 0 : index
    %64 = vector.load %arg8[%c0_32, %c0_33] : memref<1x128xf32, #tpu.memory_space<vmem>>, vector<1x128xf32>
    %65 = vector.broadcast %64 : vector<1x128xf32> to vector<32x128xf32>
    %66 = arith.addf %63, %65 : vector<32x128xf32>
    %cst_34 = arith.constant 0.000000e+00 : f32
    %67 = vector.broadcast %cst_34 : f32 to vector<32x128xf32>
    %68 = arith.maximumf %66, %67 : vector<32x128xf32>
    %c2_i32_35 = arith.constant 2 : i32
    %69 = tpu.dynamic_rotate %68 by %c2_i32_35 dim 0 : vector<32x128xf32>, i32 -> vector<32x128xf32>
    %c2_i32_36 = arith.constant 2 : i32
    %70 = vector.broadcast %c2_i32_36 : i32 to vector<32x128xi32>
    %71 = arith.cmpi sge, %16, %70 : vector<32x128xi32>
    %cst_37 = arith.constant 0.000000e+00 : f32
    %72 = vector.broadcast %cst_37 : f32 to vector<32x128xf32>
    %73 = arith.select %71, %69, %72 : vector<32x128xi1>, vector<32x128xf32>
    %74 = tpu.concatenate %68, %73 in 1 : vector<32x128xf32>, vector<32x128xf32> -> vector<32x256xf32>
    %75 = arith.truncf %74 : vector<32x256xf32> to vector<32x256xbf16>
    %c0_38 = arith.constant 0 : index
    %c0_39 = arith.constant 0 : index
    %76 = vector.load %arg9[%c0_38, %c0_39] : memref<256x128xbf16, #tpu.memory_space<vmem>>, vector<256x128xbf16>
    %cst_40 = arith.constant dense<0.000000e+00> : vector<32x128xf32>
    %77 = tpu.matmul %75, %76, %cst_40 {dimension_numbers = #tpu.dot_dimension_numbers<[1], [0], [0], [1], [0, 0, 1, 1], [], []>} : vector<32x256xbf16>, vector<256x128xbf16>, vector<32x128xf32> -> vector<32x128xf32>
    %c0_41 = arith.constant 0 : index
    %c0_42 = arith.constant 0 : index
    %78 = vector.load %arg10[%c0_41, %c0_42] : memref<1x128xf32, #tpu.memory_space<vmem>>, vector<1x128xf32>
    %79 = vector.broadcast %78 : vector<1x128xf32> to vector<32x128xf32>
    %80 = arith.addf %77, %79 : vector<32x128xf32>
    %cst_43 = arith.constant 0.000000e+00 : f32
    %81 = vector.broadcast %cst_43 : f32 to vector<32x128xf32>
    %82 = arith.maximumf %80, %81 : vector<32x128xf32>
    %83 = arith.addf %82, %54 : vector<32x128xf32>
    %cst_44 = arith.constant 0.000000e+00 : f32
    %84 = vector.broadcast %cst_44 : f32 to vector<32x128xf32>
    %85 = arith.maximumf %83, %84 : vector<32x128xf32>
    %86 = arith.truncf %85 : vector<32x128xf32> to vector<32x128xbf16>
    %c0_45 = arith.constant 0 : index
    %c0_46 = arith.constant 0 : index
    %87 = vector.load %arg11[%c0_45, %c0_46] : memref<128x128xbf16, #tpu.memory_space<vmem>>, vector<128x128xbf16>
    %cst_47 = arith.constant dense<0.000000e+00> : vector<32x128xf32>
    %88 = tpu.matmul %86, %87, %cst_47 {dimension_numbers = #tpu.dot_dimension_numbers<[1], [0], [0], [1], [0, 0, 1, 1], [], []>} : vector<32x128xbf16>, vector<128x128xbf16>, vector<32x128xf32> -> vector<32x128xf32>
    %c0_48 = arith.constant 0 : index
    %c0_49 = arith.constant 0 : index
    %89 = vector.load %arg12[%c0_48, %c0_49] : memref<1x128xf32, #tpu.memory_space<vmem>>, vector<1x128xf32>
    %90 = vector.broadcast %89 : vector<1x128xf32> to vector<32x128xf32>
    %91 = arith.addf %88, %90 : vector<32x128xf32>
    %92 = math.tanh %91 : vector<32x128xf32>
    %c0_50 = arith.constant 0 : index
    %c0_51 = arith.constant 0 : index
    %93 = vector.load %arg13[%c0_50, %c0_51] : memref<32x128xf32, #tpu.memory_space<vmem>>, vector<32x128xf32>
    tpu.vector_store %arg13[%c0_50, %c0_51], %92 {strides = array<i32>} : memref<32x128xf32, #tpu.memory_space<vmem>>, vector<32x128xf32>,
    return
  }
}

</mosaic_0001>

<llo_original>
// kernel: generator_forward.1
$region0: #{generator_forward.1}
  #allocation0 [shape = 'u32[]', space=smem, size = 0x4, offset = 0x4, fixed_abs, tag = 'smem constant byte address 0x4 - core index']
  #allocation1 [shape = 'u32[144,128]{1,0:T(1,128)}', space=vmem, size = 0x12000, scoped, tag = 'internal scratch']
  %s0 = inlined_call_operand.vmem [shape: f32[32,128], index: 0, kind: input, shape index: {}]
  %s1 = inlined_call_operand.hbm [shape: bf16[256,128], index: 1, kind: input, shape index: {}]
  %s2 = inlined_call_operand.vmem [shape: f32[1,128], index: 2, kind: input, shape index: {}]
  %s3 = inlined_call_operand.hbm [shape: bf16[256,128], index: 3, kind: input, shape index: {}]
  %s4 = inlined_call_operand.vmem [shape: f32[1,128], index: 4, kind: input, shape index: {}]
  %s5 = inlined_call_operand.hbm [shape: bf16[128,128], index: 5, kind: input, shape index: {}]
  %s6 = inlined_call_operand.vmem [shape: f32[1,128], index: 6, kind: input, shape index: {}]
  %s7 = inlined_call_operand.vmem [shape: bf16[256,128], index: 7, kind: input, shape index: {}]
  %s8 = inlined_call_operand.vmem [shape: f32[1,128], index: 8, kind: input, shape index: {}]
  %s9 = inlined_call_operand.hbm [shape: bf16[256,128], index: 9, kind: input, shape index: {}]
  %s10 = inlined_call_operand.vmem [shape: f32[1,128], index: 10, kind: input, shape index: {}]
  %s11 = inlined_call_operand.hbm [shape: bf16[128,128], index: 11, kind: input, shape index: {}]
  %s12 = inlined_call_operand.vmem [shape: f32[1,128], index: 12, kind: input, shape index: {}]
  %s13 = inlined_call_operand.vmem [shape: f32[32,128], index: 13, kind: output, shape index: {}]
  %s14 = sld [smem:[#allocation0]]
  $region82: #{generator_forward.1} parent=0
    _
  %s16 = ssub.s32 1, %s14
  %s17 = scalar_select 0, %s16, %s14
  $region1: #{generator_forward.1} parent=0
    #allocation2 [shape = 'u8[65536]{0}', space=vmem, size = 0x10000, scoped, tag = 'input window, operand 1, single buffered']
    #allocation3 [shape = 's32[1]{0}', space=sflag, size = 0x4, scoped, tag = 'scoped memory for generator_forward.1']
    #allocation4 [shape = 'u8[65536]{0}', space=vmem, size = 0x10000, scoped, tag = 'input window, operand 3, single buffered']
    #allocation5 [shape = 's32[1]{0}', space=sflag, size = 0x4, scoped, tag = 'scoped memory for generator_forward.1']
    #allocation6 [shape = 'u8[32768]{0}', space=vmem, size = 0x8000, scoped, tag = 'input window, operand 5, single buffered']
    #allocation7 [shape = 'u8[65536]{0}', space=vmem, size = 0x10000, scoped, tag = 'input window, operand 9, single buffered']
    #allocation8 [shape = 's32[1]{0}', space=sflag, size = 0x4, scoped, tag = 'scoped memory for generator_forward.1']
    #allocation9 [shape = 'u8[32768]{0}', space=vmem, size = 0x8000, scoped, tag = 'input window, operand 11, single buffered']
    %18 = vsyncpa [#allocation3], 0
    %19 = vsyncpa [#allocation5], 0
    %20 = vsyncpa [#allocation8], 0
    // Predicated region
    $region2: #{generator_forward.1} parent=1 // pred_check
      _
    $region3: #{generator_forward.1} parent=1 // pred_check_branch
      %22 = sbr.rel (0) target = $region5
    $region4: #{generator_forward.1} parent=1 // pred_region
      _
    $region5: #{generator_forward.1} parent=1 // pred_fallthru
      _
    // Predicated region
    $region6: #{generator_forward.1} parent=1 // pred_check
      _
    $region7: #{generator_forward.1} parent=1 // pred_check_branch
      %24 = sbr.rel (0) target = $region9
    $region8: #{generator_forward.1} parent=1 // pred_region
      %s26 = ssub.s32 2048, 2048
      %27 = vsyncadd [#allocation3], %s26
      %s28 = sshll.u32 [#allocation2], 4
      %s29 = int_to_ptr.vmem [resolvable:$true] %s28
      %34 = dma.hbm_to_vmem [thread:$0]  %s1, 2048, %s29, [#allocation3], 64, 64, 4
    $region9: #{generator_forward.1} parent=1 // pred_fallthru
      _
    // Predicated region
    $region10: #{generator_forward.1} parent=1 // pred_check
      _
    $region11: #{generator_forward.1} parent=1 // pred_check_branch
      %36 = sbr.rel (0) target = $region13
    $region12: #{generator_forward.1} parent=1 // pred_region
      _
    $region13: #{generator_forward.1} parent=1 // pred_fallthru
      _
    // Predicated region
    $region14: #{generator_forward.1} parent=1 // pred_check
      _
    $region15: #{generator_forward.1} parent=1 // pred_check_branch
      %38 = sbr.rel (0) target = $region17
    $region16: #{generator_forward.1} parent=1 // pred_region
      %s40 = ssub.s32 2048, 2048
      %41 = vsyncadd [#allocation5], %s40
      %s42 = sshll.u32 [#allocation4], 4
      %s43 = int_to_ptr.vmem [resolvable:$true] %s42
      %48 = dma.hbm_to_vmem [thread:$0]  %s3, 2048, %s43, [#allocation5], 64, 64, 4
    $region17: #{generator_forward.1} parent=1 // pred_fallthru
      _
    // Predicated region
    $region18: #{generator_forward.1} parent=1 // pred_check
      _
    $region19: #{generator_forward.1} parent=1 // pred_check_branch
      %50 = sbr.rel (0) target = $region21
    $region20: #{generator_forward.1} parent=1 // pred_region
      _
    $region21: #{generator_forward.1} parent=1 // pred_fallthru
      _
    // Predicated region
    $region22: #{generator_forward.1} parent=1 // pred_check
      _
    $region23: #{generator_forward.1} parent=1 // pred_check_branch
      %52 = sbr.rel (0) target = $region25
    $region24: #{generator_forward.1} parent=1 // pred_region
      %s54 = ssub.s32 1024, 1024
      %55 = vsyncadd [#allocation5], %s54
      %s56 = sshll.u32 [#allocation6], 4
      %s57 = int_to_ptr.vmem [resolvable:$true] %s56
      %62 = dma.hbm_to_vmem [thread:$0]  %s5, 1024, %s57, [#allocation5], 64, 64, 4
    $region25: #{generator_forward.1} parent=1 // pred_fallthru
      _
    // Predicated region
    $region26: #{generator_forward.1} parent=1 // pred_check
      _
    $region27: #{generator_forward.1} parent=1 // pred_check_branch
      %64 = sbr.rel (0) target = $region29
    $region28: #{generator_forward.1} parent=1 // pred_region
      _
    $region29: #{generator_forward.1} parent=1 // pred_fallthru
      _
    // Predicated region
    $region30: #{generator_forward.1} parent=1 // pred_check
      _
    $region31: #{generator_forward.1} parent=1 // pred_check_branch
      %66 = sbr.rel (0) target = $region33
    $region32: #{generator_forward.1} parent=1 // pred_region
      _
    $region33: #{generator_forward.1} parent=1 // pred_fallthru
      _
    // Predicated region
    $region34: #{generator_forward.1} parent=1 // pred_check
      _
    $region35: #{generator_forward.1} parent=1 // pred_check_branch
      %68 = sbr.rel (0) target = $region37
    $region36: #{generator_forward.1} parent=1 // pred_region
      _
    $region37: #{generator_forward.1} parent=1 // pred_fallthru
      _
    // Predicated region
    $region38: #{generator_forward.1} parent=1 // pred_check
      _
    $region39: #{generator_forward.1} parent=1 // pred_check_branch
      %70 = sbr.rel (0) target = $region41
    $region40: #{generator_forward.1} parent=1 // pred_region
      %s72 = ssub.s32 2048, 2048
      %73 = vsyncadd [#allocation8], %s72
      %s74 = sshll.u32 [#allocation7], 4
      %s75 = int_to_ptr.vmem [resolvable:$true] %s74
      %80 = dma.hbm_to_vmem [thread:$0]  %s9, 2048, %s75, [#allocation8], 64, 64, 4
    $region41: #{generator_forward.1} parent=1 // pred_fallthru
      _
    // Predicated region
    $region42: #{generator_forward.1} parent=1 // pred_check
      _
    $region43: #{generator_forward.1} parent=1 // pred_check_branch
      %82 = sbr.rel (0) target = $region45
    $region44: #{generator_forward.1} parent=1 // pred_region
      _
    $region45: #{generator_forward.1} parent=1 // pred_fallthru
      _
    // Predicated region
    $region46: #{generator_forward.1} parent=1 // pred_check
      _
    $region47: #{generator_forward.1} parent=1 // pred_check_branch
      %84 = sbr.rel (0) target = $region49
    $region48: #{generator_forward.1} parent=1 // pred_region
      %s86 = ssub.s32 1024, 1024
      %87 = vsyncadd [#allocation8], %s86
      %s88 = sshll.u32 [#allocation9], 4
      %s89 = int_to_ptr.vmem [resolvable:$true] %s88
      %94 = dma.hbm_to_vmem [thread:$0]  %s11, 1024, %s89, [#allocation8], 64, 64, 4
    $region49: #{generator_forward.1} parent=1 // pred_fallthru
      _
    // Predicated region
    $region50: #{generator_forward.1} parent=1 // pred_check
      _
    $region51: #{generator_forward.1} parent=1 // pred_check_branch
      %96 = sbr.rel (0) target = $region53
    $region52: #{generator_forward.1} parent=1 // pred_region
      _
    $region53: #{generator_forward.1} parent=1 // pred_fallthru
      _
    // Predicated region
    $region54: #{generator_forward.1} parent=1 // pred_check
      _
    $region55: #{generator_forward.1} parent=1 // pred_check_branch
      %98 = sbr.rel (0) target = $region57
    $region56: #{generator_forward.1} parent=1 // pred_region
      %99 = dma.done [#allocation3], 2048
    $region57: #{generator_forward.1} parent=1 // pred_fallthru
      _
    // Predicated region
    $region58: #{generator_forward.1} parent=1 // pred_check
      _
    $region59: #{generator_forward.1} parent=1 // pred_check_branch
      %101 = sbr.rel (0) target = $region61
    $region60: #{generator_forward.1} parent=1 // pred_region
      %102 = dma.done [#allocation5], 2048
    $region61: #{generator_forward.1} parent=1 // pred_fallthru
      _
    // Predicated region
    $region62: #{generator_forward.1} parent=1 // pred_check
      _
    $region63: #{generator_forward.1} parent=1 // pred_check_branch
      %104 = sbr.rel (0) target = $region65
    $region64: #{generator_forward.1} parent=1 // pred_region
      %105 = dma.done [#allocation5], 1024
    $region65: #{generator_forward.1} parent=1 // pred_fallthru
      _
    // Predicated region
    $region66: #{generator_forward.1} parent=1 // pred_check
      _
    $region67: #{generator_forward.1} parent=1 // pred_check_branch
      %107 = sbr.rel (0) target = $region69
    $region68: #{generator_forward.1} parent=1 // pred_region
      %108 = dma.done [#allocation8], 2048
    $region69: #{generator_forward.1} parent=1 // pred_fallthru
      _
    // Predicated region
    $region70: #{generator_forward.1} parent=1 // pred_check
      _
    $region71: #{generator_forward.1} parent=1 // pred_check_branch
      %110 = sbr.rel (0) target = $region73
    $region72: #{generator_forward.1} parent=1 // pred_region
      %111 = dma.done [#allocation8], 1024
    $region73: #{generator_forward.1} parent=1 // pred_fallthru
      _
    %v113 = vlaneseq
    %v114 = vshrl.u32 %v113, 7
    %v115 = vadd.s32 %v114, 8
    %v116 = vadd.s32 %v114, 16
    %v117 = vadd.s32 %v114, 24
    %vm118 = vcmp.lt.s32.totalorder %v114, 0
    %v119 = vsub.s32 0, %v114
    %v120 = vsel %vm118, %v119, %v114
    %v121 = vshrl.u32 %v120, 4
    %v122 = vand.u32 %v120, 15
    %v123 = vsub.s32 0, %v122
    %v124 = vsel %vm118, %v123, %v122
    %vm125 = vcmp.lt.s32.totalorder %v115, 0
    %v126 = vsub.s32 0, %v115
    %v127 = vsel %vm125, %v126, %v115
    %v128 = vshrl.u32 %v127, 4
    %v129 = vand.u32 %v127, 15
    %v130 = vsub.s32 0, %v129
    %v131 = vsel %vm125, %v130, %v129
    %vm132 = vcmp.lt.s32.totalorder %v116, 0
    %v133 = vsub.s32 0, %v116
    %v134 = vsel %vm132, %v133, %v116
    %v135 = vshrl.u32 %v134, 4
    %v136 = vand.u32 %v134, 15
    %v137 = vsub.s32 0, %v136
    %v138 = vsel %vm132, %v137, %v136
    %vm139 = vcmp.lt.s32.totalorder %v117, 0
    %v140 = vsub.s32 0, %v117
    %v141 = vsel %vm139, %v140, %v117
    %v142 = vshrl.u32 %v141, 4
    %v143 = vand.u32 %v141, 15
    %v144 = vsub.s32 0, %v143
    %v145 = vsel %vm139, %v144, %v143
    %vm146 = vcmp.ne.s32.totalorder %v124, 0
    %vm147 = vcmp.ne.s32.totalorder %v131, 0
    %vm148 = vcmp.ne.s32.totalorder %v138, 0
    %vm149 = vcmp.ne.s32.totalorder %v145, 0
    %vm150 = vcmp.lt.s32.totalorder %v124, 0
    %vm151 = vcmp.lt.s32.totalorder %v131, 0
    %vm152 = vcmp.lt.s32.totalorder %v138, 0
    %vm153 = vcmp.lt.s32.totalorder %v145, 0
    %vm154 = vmand %vm150, %vm146
    %vm155 = vmand %vm151, %vm147
    %vm156 = vmand %vm152, %vm148
    %vm157 = vmand %vm153, %vm149
    %v158 = vadd.s32 %v124, 16
    %v159 = vadd.s32 %v131, 16
    %v160 = vadd.s32 %v138, 16
    %v161 = vadd.s32 %v145, 16
    %v162 = vsel %vm154, %v158, %v124
    %v163 = vsel %vm155, %v159, %v131
    %v164 = vsel %vm156, %v160, %v138
    %v165 = vsel %vm157, %v161, %v145
    %v166 = vld [vmem:[%s0] sm:$0xff]
    %v167 = vld [vmem:[%s0 + $0x8] sm:$0xff]
    %v168 = vld [vmem:[%s0 + $0x10] sm:$0xff]
    %v169 = vld [vmem:[%s0 + $0x18] sm:$0xff]
    %v170 = vrot.slane %v166, 7
    %v171 = vrot.slane %v167, 7
    %v172 = vrot.slane %v168, 7
    %v173 = vrot.slane %v169, 7
    %vm174 = vcmp.lt.s32.totalorder %v114, 1
    %v175 = vsel %vm174, %v172, %v173
    %v176 = vsel %vm174, %v171, %v172
    %v177 = vsel %vm174, %v170, %v171
    %v178 = vsel %vm174, %v173, %v170
    %vm179 = vcmp.ge.s32.totalorder %v162, 1
    %vm180 = vcmp.ge.s32.totalorder %v163, 1
    %vm181 = vcmp.ge.s32.totalorder %v164, 1
    %vm182 = vcmp.ge.s32.totalorder %v165, 1
    %v183 = vsel %vm179, %v178, 0.0
    %v184 = vsel %vm180, %v177, 0.0
    %v185 = vsel %vm181, %v176, 0.0
    %v186 = vsel %vm182, %v175, 0.0
    %v187 = vpack.c.bf16 %v167, %v166
    %v188 = vpack.c.bf16 %v184, %v183
    %v189 = vpack.c.bf16 %v169, %v168
    %v190 = vpack.c.bf16 %v186, %v185
    %v191 = vld [vmem:[#allocation2] sm:$0xf]
    %v192 = vld [vmem:[#allocation2 + $0x4] sm:$0xf]
    %v193 = vld [vmem:[#allocation2 + $0x8] sm:$0xf]
    %v194 = vld [vmem:[#allocation2 + $0xc] sm:$0xf]
    %v195 = vld [vmem:[#allocation2 + $0x10] sm:$0xf]
    %v196 = vld [vmem:[#allocation2 + $0x14] sm:$0xf]
    %v197 = vld [vmem:[#allocation2 + $0x18] sm:$0xf]
    %v198 = vld [vmem:[#allocation2 + $0x1c] sm:$0xf]
    %v199 = vld [vmem:[#allocation2 + $0x20] sm:$0xf]
    %v200 = vld [vmem:[#allocation2 + $0x24] sm:$0xf]
    %v201 = vld [vmem:[#allocation2 + $0x28] sm:$0xf]
    %v202 = vld [vmem:[#allocation2 + $0x2c] sm:$0xf]
    %v203 = vld [vmem:[#allocation2 + $0x30] sm:$0xf]
    %v204 = vld [vmem:[#allocation2 + $0x34] sm:$0xf]
    %v205 = vld [vmem:[#allocation2 + $0x38] sm:$0xf]
    %v206 = vld [vmem:[#allocation2 + $0x3c] sm:$0xf]
    %v207 = vld [vmem:[#allocation2 + $0x40] sm:$0xf]
    %v208 = vld [vmem:[#allocation2 + $0x44] sm:$0xf]
    %v209 = vld [vmem:[#allocation2 + $0x48] sm:$0xf]
    %v210 = vld [vmem:[#allocation2 + $0x4c] sm:$0xf]
    %v211 = vld [vmem:[#allocation2 + $0x50] sm:$0xf]
    %v212 = vld [vmem:[#allocation2 + $0x54] sm:$0xf]
    %v213 = vld [vmem:[#allocation2 + $0x58] sm:$0xf]
    %v214 = vld [vmem:[#allocation2 + $0x5c] sm:$0xf]
    %v215 = vld [vmem:[#allocation2 + $0x60] sm:$0xf]
    %v216 = vld [vmem:[#allocation2 + $0x64] sm:$0xf]
    %v217 = vld [vmem:[#allocation2 + $0x68] sm:$0xf]
    %v218 = vld [vmem:[#allocation2 + $0x6c] sm:$0xf]
    %v219 = vld [vmem:[#allocation2 + $0x70] sm:$0xf]
    %v220 = vld [vmem:[#allocation2 + $0x74] sm:$0xf]
    %v221 = vld [vmem:[#allocation2 + $0x78] sm:$0xf]
    %v222 = vld [vmem:[#allocation2 + $0x7c] sm:$0xf]
    %v223 = vld [vmem:[%s2] sm:$0x1]
    %v225 = vlaneseq
    %v226 = vshrl.u32 %v225, 7
    %v227 = vsub.s32 0, %v226
    %v228 = vrot.slane %v223, %v227
    %v262 = vunpack.c.l.b16 %v191
    %v263 = vunpack.c.l.b16 %v192
    %v264 = vunpack.c.l.b16 %v193
    %v265 = vunpack.c.l.b16 %v194
    %v266 = vunpack.c.l.b16 %v195
    %v267 = vunpack.c.l.b16 %v196
    %v268 = vunpack.c.l.b16 %v197
    %v269 = vunpack.c.l.b16 %v198
    %v270 = vunpack.c.l.b16 %v199
    %v271 = vunpack.c.l.b16 %v200
    %v272 = vunpack.c.l.b16 %v201
    %v273 = vunpack.c.l.b16 %v202
    %v274 = vunpack.c.l.b16 %v203
    %v275 = vunpack.c.l.b16 %v204
    %v276 = vunpack.c.l.b16 %v205
    %v277 = vunpack.c.l.b16 %v206
    %v278 = vunpack.c.l.b16 %v207
    %v279 = vunpack.c.l.b16 %v208
    %v280 = vunpack.c.l.b16 %v209
    %v281 = vunpack.c.l.b16 %v210
    %v282 = vunpack.c.l.b16 %v211
    %v283 = vunpack.c.l.b16 %v212
    %v284 = vunpack.c.l.b16 %v213
    %v285 = vunpack.c.l.b16 %v214
    %v286 = vunpack.c.l.b16 %v215
    %v287 = vunpack.c.l.b16 %v216
    %v288 = vunpack.c.l.b16 %v217
    %v289 = vunpack.c.l.b16 %v218
    %v290 = vunpack.c.l.b16 %v219
    %v291 = vunpack.c.l.b16 %v220
    %v292 = vunpack.c.l.b16 %v221
    %v293 = vunpack.c.l.b16 %v222
    %v294 = vpack.c.b16 %v263, %v262
    %v295 = vpack.c.b16 %v265, %v264
    %v296 = vpack.c.b16 %v267, %v266
    %v297 = vpack.c.b16 %v269, %v268
    %v298 = vpack.c.b16 %v271, %v270
    %v299 = vpack.c.b16 %v273, %v272
    %v300 = vpack.c.b16 %v275, %v274
    %v301 = vpack.c.b16 %v277, %v276
    %v302 = vpack.c.b16 %v279, %v278
    %v303 = vpack.c.b16 %v281, %v280
    %v304 = vpack.c.b16 %v283, %v282
    %v305 = vpack.c.b16 %v285, %v284
    %v306 = vpack.c.b16 %v287, %v286
    %v307 = vpack.c.b16 %v289, %v288
    %v308 = vpack.c.b16 %v291, %v290
    %v309 = vpack.c.b16 %v293, %v292
    %326 = vmatprep.subr.bf16.mxu0 0
    %327 = vmatpush1.bf16.msra.mxu0 %v294
    %328 = vmatprep.subr.bf16.mxu0 0
    %329 = vmatpush1.bf16.msra.mxu0 %v295
    %330 = vmatprep.subr.bf16.mxu0 0
    %331 = vmatpush1.bf16.msra.mxu0 %v296
    %332 = vmatprep.subr.bf16.mxu0 0
    %333 = vmatpush1.bf16.msra.mxu0 %v297
    %334 = vmatprep.subr.bf16.mxu0 0
    %335 = vmatpush1.bf16.msra.mxu0 %v298
    %336 = vmatprep.subr.bf16.mxu0 0
    %337 = vmatpush1.bf16.msra.mxu0 %v299
    %338 = vmatprep.subr.bf16.mxu0 0
    %339 = vmatpush1.bf16.msra.mxu0 %v300
    %340 = vmatprep.subr.bf16.mxu0 0
    %341 = vmatpush1.bf16.msra.mxu0 %v301
    %342 = vmatprep.subr.bf16.mxu0 0
    %343 = vmatpush1.bf16.msra.mxu0 %v302
    %344 = vmatprep.subr.bf16.mxu0 0
    %345 = vmatpush1.bf16.msra.mxu0 %v303
    %346 = vmatprep.subr.bf16.mxu0 0
    %347 = vmatpush1.bf16.msra.mxu0 %v304
    %348 = vmatprep.subr.bf16.mxu0 0
    %349 = vmatpush1.bf16.msra.mxu0 %v305
    %350 = vmatprep.subr.bf16.mxu0 0
    %351 = vmatpush1.bf16.msra.mxu0 %v306
    %352 = vmatprep.subr.bf16.mxu0 0
    %353 = vmatpush1.bf16.msra.mxu0 %v307
    %354 = vmatprep.subr.bf16.mxu0 0
    %355 = vmatpush1.bf16.msra.mxu0 %v308
    %356 = vmatprep.subr.bf16.mxu0 0
    %357 = vmatpush1.bf16.msra.mxu0 %v309
    %358 = vmatprep.mubr.bf16.mxu0 %v188
    %359 = vmatmul.mubr.bf16.gmra.mrb[0].mxu0 %v187
    %v360 = vpop.f32.mrb[0].mxu0
    %v361 = vadd.f32 %v228, %v360
    %v362 = vpop.f32.mrb[0].mxu0
    %v363 = vpop.f32.mrb[0].mxu0
    %v364 = vadd.f32 %v228, %v363
    %v365 = vpop.f32.mrb[0].mxu0
    %366 = vmatprep.mubr.bf16.mxu0 %v190
    %367 = vmatmul.mubr.bf16.gmra.mrb[0].mxu0 %v189
    %v368 = vpop.f32.mrb[0].mxu0
    %v369 = vadd.f32 %v228, %v368
    %v370 = vpop.f32.mrb[0].mxu0
    %v371 = vpop.f32.mrb[0].mxu0
    %v372 = vadd.f32 %v228, %v371
    %v373 = vpop.f32.mrb[0].mxu0
    %374 = vdwg.mxu0
    %v375 = vmax.f32 %v361, 0.0
    %v376 = vmax.f32 %v364, 0.0
    %v377 = vmax.f32 %v369, 0.0
    %v378 = vmax.f32 %v372, 0.0
    %v379 = vrot.slane %v375, 7
    %v380 = vrot.slane %v376, 7
    %v381 = vrot.slane %v377, 7
    %v382 = vrot.slane %v378, 7
    %v383 = vsel %vm174, %v381, %v382
    %v384 = vsel %vm174, %v380, %v381
    %v385 = vsel %vm174, %v379, %v380
    %v386 = vsel %vm174, %v382, %v379
    %v387 = vsel %vm179, %v386, 0.0
    %v388 = vsel %vm180, %v385, 0.0
    %v389 = vsel %vm181, %v384, 0.0
    %v390 = vsel %vm182, %v383, 0.0
    %v391 = vpack.c.bf16 %v376, %v375
    %v392 = vpack.c.bf16 %v388, %v387
    %v393 = vpack.c.bf16 %v378, %v377
    %v394 = vpack.c.bf16 %v390, %v389
    %v395 = vld [vmem:[#allocation4] sm:$0xf]
    %v396 = vld [vmem:[#allocation4 + $0x4] sm:$0xf]
    %v397 = vld [vmem:[#allocation4 + $0x8] sm:$0xf]
    %v398 = vld [vmem:[#allocation4 + $0xc] sm:$0xf]
    %v399 = vld [vmem:[#allocation4 + $0x10] sm:$0xf]
    %v400 = vld [vmem:[#allocation4 + $0x14] sm:$0xf]
    %v401 = vld [vmem:[#allocation4 + $0x18] sm:$0xf]
    %v402 = vld [vmem:[#allocation4 + $0x1c] sm:$0xf]
    %v403 = vld [vmem:[#allocation4 + $0x20] sm:$0xf]
    %v404 = vld [vmem:[#allocation4 + $0x24] sm:$0xf]
    %v405 = vld [vmem:[#allocation4 + $0x28] sm:$0xf]
    %v406 = vld [vmem:[#allocation4 + $0x2c] sm:$0xf]
    %v407 = vld [vmem:[#allocation4 + $0x30] sm:$0xf]
    %v408 = vld [vmem:[#allocation4 + $0x34] sm:$0xf]
    %v409 = vld [vmem:[#allocation4 + $0x38] sm:$0xf]
    %v410 = vld [vmem:[#allocation4 + $0x3c] sm:$0xf]
    %v411 = vld [vmem:[#allocation4 + $0x40] sm:$0xf]
    %v412 = vld [vmem:[#allocation4 + $0x44] sm:$0xf]
    %v413 = vld [vmem:[#allocation4 + $0x48] sm:$0xf]
    %v414 = vld [vmem:[#allocation4 + $0x4c] sm:$0xf]
    %v415 = vld [vmem:[#allocation4 + $0x50] sm:$0xf]
    %v416 = vld [vmem:[#allocation4 + $0x54] sm:$0xf]
    %v417 = vld [vmem:[#allocation4 + $0x58] sm:$0xf]
    %v418 = vld [vmem:[#allocation4 + $0x5c] sm:$0xf]
    %v419 = vld [vmem:[#allocation4 + $0x60] sm:$0xf]
    %v420 = vld [vmem:[#allocation4 + $0x64] sm:$0xf]
    %v421 = vld [vmem:[#allocation4 + $0x68] sm:$0xf]
    %v422 = vld [vmem:[#allocation4 + $0x6c] sm:$0xf]
    %v423 = vld [vmem:[#allocation4 + $0x70] sm:$0xf]
    %v424 = vld [vmem:[#allocation4 + $0x74] sm:$0xf]
    %v425 = vld [vmem:[#allocation4 + $0x78] sm:$0xf]
    %v426 = vld [vmem:[#allocation4 + $0x7c] sm:$0xf]
    %v427 = vld [vmem:[%s4] sm:$0x1]
    %v429 = vlaneseq
    %v430 = vshrl.u32 %v429, 7
    %v431 = vsub.s32 0, %v430
    %v432 = vrot.slane %v427, %v431
    %v466 = vunpack.c.l.b16 %v395
    %v467 = vunpack.c.l.b16 %v396
    %v468 = vunpack.c.l.b16 %v397
    %v469 = vunpack.c.l.b16 %v398
    %v470 = vunpack.c.l.b16 %v399
    %v471 = vunpack.c.l.b16 %v400
    %v472 = vunpack.c.l.b16 %v401
    %v473 = vunpack.c.l.b16 %v402
    %v474 = vunpack.c.l.b16 %v403
    %v475 = vunpack.c.l.b16 %v404
    %v476 = vunpack.c.l.b16 %v405
    %v477 = vunpack.c.l.b16 %v406
    %v478 = vunpack.c.l.b16 %v407
    %v479 = vunpack.c.l.b16 %v408
    %v480 = vunpack.c.l.b16 %v409
    %v481 = vunpack.c.l.b16 %v410
    %v482 = vunpack.c.l.b16 %v411
    %v483 = vunpack.c.l.b16 %v412
    %v484 = vunpack.c.l.b16 %v413
    %v485 = vunpack.c.l.b16 %v414
    %v486 = vunpack.c.l.b16 %v415
    %v487 = vunpack.c.l.b16 %v416
    %v488 = vunpack.c.l.b16 %v417
    %v489 = vunpack.c.l.b16 %v418
    %v490 = vunpack.c.l.b16 %v419
    %v491 = vunpack.c.l.b16 %v420
    %v492 = vunpack.c.l.b16 %v421
    %v493 = vunpack.c.l.b16 %v422
    %v494 = vunpack.c.l.b16 %v423
    %v495 = vunpack.c.l.b16 %v424
    %v496 = vunpack.c.l.b16 %v425
    %v497 = vunpack.c.l.b16 %v426
    %v498 = vpack.c.b16 %v467, %v466
    %v499 = vpack.c.b16 %v469, %v468
    %v500 = vpack.c.b16 %v471, %v470
    %v501 = vpack.c.b16 %v473, %v472
    %v502 = vpack.c.b16 %v475, %v474
    %v503 = vpack.c.b16 %v477, %v476
    %v504 = vpack.c.b16 %v479, %v478
    %v505 = vpack.c.b16 %v481, %v480
    %v506 = vpack.c.b16 %v483, %v482
    %v507 = vpack.c.b16 %v485, %v484
    %v508 = vpack.c.b16 %v487, %v486
    %v509 = vpack.c.b16 %v489, %v488
    %v510 = vpack.c.b16 %v491, %v490
    %v511 = vpack.c.b16 %v493, %v492
    %v512 = vpack.c.b16 %v495, %v494
    %v513 = vpack.c.b16 %v497, %v496
    %530 = vmatprep.subr.bf16.mxu0 0
    %531 = vmatpush1.bf16.msra.mxu0 %v498
    %532 = vmatprep.subr.bf16.mxu0 0
    %533 = vmatpush1.bf16.msra.mxu0 %v499
    %534 = vmatprep.subr.bf16.mxu0 0
    %535 = vmatpush1.bf16.msra.mxu0 %v500
    %536 = vmatprep.subr.bf16.mxu0 0
    %537 = vmatpush1.bf16.msra.mxu0 %v501
    %538 = vmatprep.subr.bf16.mxu0 0
    %539 = vmatpush1.bf16.msra.mxu0 %v502
    %540 = vmatprep.subr.bf16.mxu0 0
    %541 = vmatpush1.bf16.msra.mxu0 %v503
    %542 = vmatprep.subr.bf16.mxu0 0
    %543 = vmatpush1.bf16.msra.mxu0 %v504
    %544 = vmatprep.subr.bf16.mxu0 0
    %545 = vmatpush1.bf16.msra.mxu0 %v505
    %546 = vmatprep.subr.bf16.mxu0 0
    %547 = vmatpush1.bf16.msra.mxu0 %v506
    %548 = vmatprep.subr.bf16.mxu0 0
    %549 = vmatpush1.bf16.msra.mxu0 %v507
    %550 = vmatprep.subr.bf16.mxu0 0
    %551 = vmatpush1.bf16.msra.mxu0 %v508
    %552 = vmatprep.subr.bf16.mxu0 0
    %553 = vmatpush1.bf16.msra.mxu0 %v509
    %554 = vmatprep.subr.bf16.mxu0 0
    %555 = vmatpush1.bf16.msra.mxu0 %v510
    %556 = vmatprep.subr.bf16.mxu0 0
    %557 = vmatpush1.bf16.msra.mxu0 %v511
    %558 = vmatprep.subr.bf16.mxu0 0
    %559 = vmatpush1.bf16.msra.mxu0 %v512
    %560 = vmatprep.subr.bf16.mxu0 0
    %561 = vmatpush1.bf16.msra.mxu0 %v513
    %562 = vmatprep.mubr.bf16.mxu0 %v392
    %563 = vmatmul.mubr.bf16.gmra.mrb[0].mxu0 %v391
    %v564 = vpop.f32.mrb[0].mxu0
    %v565 = vadd.f32 %v432, %v564
    %v566 = vpop.f32.mrb[0].mxu0
    %v567 = vpop.f32.mrb[0].mxu0
    %v568 = vadd.f32 %v432, %v567
    %v569 = vpop.f32.mrb[0].mxu0
    %570 = vmatprep.mubr.bf16.mxu0 %v394
    %571 = vmatmul.mubr.bf16.gmra.mrb[0].mxu0 %v393
    %v572 = vpop.f32.mrb[0].mxu0
    %v573 = vadd.f32 %v432, %v572
    %v574 = vpop.f32.mrb[0].mxu0
    %v575 = vpop.f32.mrb[0].mxu0
    %v576 = vadd.f32 %v432, %v575
    %v577 = vpop.f32.mrb[0].mxu0
    %578 = vdwg.mxu0
    %v579 = vmax.f32 %v565, 0.0
    %v580 = vmax.f32 %v568, 0.0
    %v581 = vmax.f32 %v573, 0.0
    %v582 = vmax.f32 %v576, 0.0
    %v583 = vld [vmem:[#allocation6] sm:$0xf]
    %v584 = vld [vmem:[#allocation6 + $0x4] sm:$0xf]
    %v585 = vld [vmem:[#allocation6 + $0x8] sm:$0xf]
    %v586 = vld [vmem:[#allocation6 + $0xc] sm:$0xf]
    %v587 = vld [vmem:[#allocation6 + $0x10] sm:$0xf]
    %v588 = vld [vmem:[#allocation6 + $0x14] sm:$0xf]
    %v589 = vld [vmem:[#allocation6 + $0x18] sm:$0xf]
    %v590 = vld [vmem:[#allocation6 + $0x1c] sm:$0xf]
    %v591 = vld [vmem:[#allocation6 + $0x20] sm:$0xf]
    %v592 = vld [vmem:[#allocation6 + $0x24] sm:$0xf]
    %v593 = vld [vmem:[#allocation6 + $0x28] sm:$0xf]
    %v594 = vld [vmem:[#allocation6 + $0x2c] sm:$0xf]
    %v595 = vld [vmem:[#allocation6 + $0x30] sm:$0xf]
    %v596 = vld [vmem:[#allocation6 + $0x34] sm:$0xf]
    %v597 = vld [vmem:[#allocation6 + $0x38] sm:$0xf]
    %v598 = vld [vmem:[#allocation6 + $0x3c] sm:$0xf]
    %v599 = vld [vmem:[%s6] sm:$0x1]
    %v601 = vlaneseq
    %v602 = vshrl.u32 %v601, 7
    %v603 = vsub.s32 0, %v602
    %v604 = vrot.slane %v599, %v603
    %v622 = vunpack.c.l.b16 %v583
    %v623 = vunpack.c.l.b16 %v584
    %v624 = vunpack.c.l.b16 %v585
    %v625 = vunpack.c.l.b16 %v586
    %v626 = vunpack.c.l.b16 %v587
    %v627 = vunpack.c.l.b16 %v588
    %v628 = vunpack.c.l.b16 %v589
    %v629 = vunpack.c.l.b16 %v590
    %v630 = vunpack.c.l.b16 %v591
    %v631 = vunpack.c.l.b16 %v592
    %v632 = vunpack.c.l.b16 %v593
    %v633 = vunpack.c.l.b16 %v594
    %v634 = vunpack.c.l.b16 %v595
    %v635 = vunpack.c.l.b16 %v596
    %v636 = vunpack.c.l.b16 %v597
    %v637 = vunpack.c.l.b16 %v598
    %v638 = vpack.c.b16 %v623, %v622
    %v639 = vpack.c.b16 %v625, %v624
    %v640 = vpack.c.b16 %v627, %v626
    %v641 = vpack.c.b16 %v629, %v628
    %v642 = vpack.c.b16 %v631, %v630
    %v643 = vpack.c.b16 %v633, %v632
    %v644 = vpack.c.b16 %v635, %v634
    %v645 = vpack.c.b16 %v637, %v636
    %654 = vmatprep.subr.bf16.mxu0 0
    %655 = vmatpush1.bf16.msra.mxu0 %v638
    %656 = vmatprep.subr.bf16.mxu0 0
    %657 = vmatpush1.bf16.msra.mxu0 %v639
    %658 = vmatprep.subr.bf16.mxu0 0
    %659 = vmatpush1.bf16.msra.mxu0 %v640
    %660 = vmatprep.subr.bf16.mxu0 0
    %661 = vmatpush1.bf16.msra.mxu0 %v641
    %662 = vmatprep.subr.bf16.mxu0 0
    %663 = vmatpush1.bf16.msra.mxu0 %v642
    %664 = vmatprep.subr.bf16.mxu0 0
    %665 = vmatpush1.bf16.msra.mxu0 %v643
    %666 = vmatprep.subr.bf16.mxu0 0
    %667 = vmatpush1.bf16.msra.mxu0 %v644
    %668 = vmatprep.subr.bf16.mxu0 0
    %669 = vmatpush1.bf16.msra.mxu0 %v645
    %670 = vmatprep.subr.bf16.mxu0 0
    %671 = vmatpush1.bf16.msra.mxu0 0
    %672 = vmatprep.subr.bf16.mxu0 0
    %673 = vmatpush1.bf16.msra.mxu0 0
    %674 = vmatprep.subr.bf16.mxu0 0
    %675 = vmatpush1.bf16.msra.mxu0 0
    %676 = vmatprep.subr.bf16.mxu0 0
    %677 = vmatpush1.bf16.msra.mxu0 0
    %678 = vmatprep.subr.bf16.mxu0 0
    %679 = vmatpush1.bf16.msra.mxu0 0
    %680 = vmatprep.subr.bf16.mxu0 0
    %681 = vmatpush1.bf16.msra.mxu0 0
    %682 = vmatprep.subr.bf16.mxu0 0
    %683 = vmatpush1.bf16.msra.mxu0 0
    %684 = vmatprep.subr.bf16.mxu0 0
    %685 = vmatpush1.bf16.msra.mxu0 0
    %686 = vmatprep.mubr.bf16.mxu0 0
    %687 = vmatmul.mubr.bf16.gmra.mrb[0].mxu0 %v187
    %v688 = vpop.f32.mrb[0].mxu0
    %v689 = vadd.f32 %v604, %v688
    %v690 = vpop.f32.mrb[0].mxu0
    %v691 = vpop.f32.mrb[0].mxu0
    %v692 = vadd.f32 %v604, %v691
    %v693 = vpop.f32.mrb[0].mxu0
    %694 = vmatprep.mubr.bf16.mxu0 0
    %695 = vmatmul.mubr.bf16.gmra.mrb[0].mxu0 %v189
    %v696 = vpop.f32.mrb[0].mxu0
    %v697 = vadd.f32 %v604, %v696
    %v698 = vpop.f32.mrb[0].mxu0
    %v699 = vpop.f32.mrb[0].mxu0
    %v700 = vadd.f32 %v604, %v699
    %v701 = vpop.f32.mrb[0].mxu0
    %702 = vdwg.mxu0
    %v703 = vadd.f32 %v579, %v689
    %v704 = vadd.f32 %v580, %v692
    %v705 = vadd.f32 %v581, %v697
    %v706 = vadd.f32 %v582, %v700
    %v707 = vmax.f32 %v703, 0.0
    %v708 = vmax.f32 %v704, 0.0
    %v709 = vmax.f32 %v705, 0.0
    %v710 = vmax.f32 %v706, 0.0
    %v711 = vrot.slane %v707, 6
    %v712 = vrot.slane %v708, 6
    %v713 = vrot.slane %v709, 6
    %v714 = vrot.slane %v710, 6
    %vm715 = vcmp.lt.s32.totalorder %v114, 2
    %v716 = vsel %vm715, %v713, %v714
    %v717 = vsel %vm715, %v712, %v713
    %v718 = vsel %vm715, %v711, %v712
    %v719 = vsel %vm715, %v714, %v711
    %vm720 = vcmp.ge.s32.totalorder %v162, 2
    %vm721 = vcmp.ge.s32.totalorder %v163, 2
    %vm722 = vcmp.ge.s32.totalorder %v164, 2
    %vm723 = vcmp.ge.s32.totalorder %v165, 2
    %v724 = vsel %vm720, %v719, 0.0
    %v725 = vsel %vm721, %v718, 0.0
    %v726 = vsel %vm722, %v717, 0.0
    %v727 = vsel %vm723, %v716, 0.0
    %v728 = vpack.c.bf16 %v708, %v707
    %v729 = vpack.c.bf16 %v725, %v724
    %v730 = vpack.c.bf16 %v710, %v709
    %v731 = vpack.c.bf16 %v727, %v726
    %v732 = vld [vmem:[%s7] sm:$0xf]
    %v733 = vld [vmem:[%s7 + $0x4] sm:$0xf]
    %v734 = vld [vmem:[%s7 + $0x8] sm:$0xf]
    %v735 = vld [vmem:[%s7 + $0xc] sm:$0xf]
    %v736 = vld [vmem:[%s7 + $0x10] sm:$0xf]
    %v737 = vld [vmem:[%s7 + $0x14] sm:$0xf]
    %v738 = vld [vmem:[%s7 + $0x18] sm:$0xf]
    %v739 = vld [vmem:[%s7 + $0x1c] sm:$0xf]
    %v740 = vld [vmem:[%s7 + $0x20] sm:$0xf]
    %v741 = vld [vmem:[%s7 + $0x24] sm:$0xf]
    %v742 = vld [vmem:[%s7 + $0x28] sm:$0xf]
    %v743 = vld [vmem:[%s7 + $0x2c] sm:$0xf]
    %v744 = vld [vmem:[%s7 + $0x30] sm:$0xf]
    %v745 = vld [vmem:[%s7 + $0x34] sm:$0xf]
    %v746 = vld [vmem:[%s7 + $0x38] sm:$0xf]
    %v747 = vld [vmem:[%s7 + $0x3c] sm:$0xf]
    %v748 = vld [vmem:[%s7 + $0x40] sm:$0xf]
    %v749 = vld [vmem:[%s7 + $0x44] sm:$0xf]
    %v750 = vld [vmem:[%s7 + $0x48] sm:$0xf]
    %v751 = vld [vmem:[%s7 + $0x4c] sm:$0xf]
    %v752 = vld [vmem:[%s7 + $0x50] sm:$0xf]
    %v753 = vld [vmem:[%s7 + $0x54] sm:$0xf]
    %v754 = vld [vmem:[%s7 + $0x58] sm:$0xf]
    %v755 = vld [vmem:[%s7 + $0x5c] sm:$0xf]
    %v756 = vld [vmem:[%s7 + $0x60] sm:$0xf]
    %v757 = vld [vmem:[%s7 + $0x64] sm:$0xf]
    %v758 = vld [vmem:[%s7 + $0x68] sm:$0xf]
    %v759 = vld [vmem:[%s7 + $0x6c] sm:$0xf]
    %v760 = vld [vmem:[%s7 + $0x70] sm:$0xf]
    %v761 = vld [vmem:[%s7 + $0x74] sm:$0xf]
    %v762 = vld [vmem:[%s7 + $0x78] sm:$0xf]
    %v763 = vld [vmem:[%s7 + $0x7c] sm:$0xf]
    %v764 = vld [vmem:[%s8] sm:$0x1]
    %v766 = vlaneseq
    %v767 = vshrl.u32 %v766, 7
    %v768 = vsub.s32 0, %v767
    %v769 = vrot.slane %v764, %v768
    %v803 = vunpack.c.l.b16 %v732
    %v804 = vunpack.c.l.b16 %v733
    %v805 = vunpack.c.l.b16 %v734
    %v806 = vunpack.c.l.b16 %v735
    %v807 = vunpack.c.l.b16 %v736
    %v808 = vunpack.c.l.b16 %v737
    %v809 = vunpack.c.l.b16 %v738
    %v810 = vunpack.c.l.b16 %v739
    %v811 = vunpack.c.l.b16 %v740
    %v812 = vunpack.c.l.b16 %v741
    %v813 = vunpack.c.l.b16 %v742
    %v814 = vunpack.c.l.b16 %v743
    %v815 = vunpack.c.l.b16 %v744
    %v816 = vunpack.c.l.b16 %v745
    %v817 = vunpack.c.l.b16 %v746
    %v818 = vunpack.c.l.b16 %v747
    %v819 = vunpack.c.l.b16 %v748
    %v820 = vunpack.c.l.b16 %v749
    %v821 = vunpack.c.l.b16 %v750
    %v822 = vunpack.c.l.b16 %v751
    %v823 = vunpack.c.l.b16 %v752
    %v824 = vunpack.c.l.b16 %v753
    %v825 = vunpack.c.l.b16 %v754
    %v826 = vunpack.c.l.b16 %v755
    %v827 = vunpack.c.l.b16 %v756
    %v828 = vunpack.c.l.b16 %v757
    %v829 = vunpack.c.l.b16 %v758
    %v830 = vunpack.c.l.b16 %v759
    %v831 = vunpack.c.l.b16 %v760
    %v832 = vunpack.c.l.b16 %v761
    %v833 = vunpack.c.l.b16 %v762
    %v834 = vunpack.c.l.b16 %v763
    %v835 = vpack.c.b16 %v804, %v803
    %v836 = vpack.c.b16 %v806, %v805
    %v837 = vpack.c.b16 %v808, %v807
    %v838 = vpack.c.b16 %v810, %v809
    %v839 = vpack.c.b16 %v812, %v811
    %v840 = vpack.c.b16 %v814, %v813
    %v841 = vpack.c.b16 %v816, %v815
    %v842 = vpack.c.b16 %v818, %v817
    %v843 = vpack.c.b16 %v820, %v819
    %v844 = vpack.c.b16 %v822, %v821
    %v845 = vpack.c.b16 %v824, %v823
    %v846 = vpack.c.b16 %v826, %v825
    %v847 = vpack.c.b16 %v828, %v827
    %v848 = vpack.c.b16 %v830, %v829
    %v849 = vpack.c.b16 %v832, %v831
    %v850 = vpack.c.b16 %v834, %v833
    %867 = vmatprep.subr.bf16.mxu0 0
    %868 = vmatpush1.bf16.msra.mxu0 %v835
    %869 = vmatprep.subr.bf16.mxu0 0
    %870 = vmatpush1.bf16.msra.mxu0 %v836
    %871 = vmatprep.subr.bf16.mxu0 0
    %872 = vmatpush1.bf16.msra.mxu0 %v837
    %873 = vmatprep.subr.bf16.mxu0 0
    %874 = vmatpush1.bf16.msra.mxu0 %v838
    %875 = vmatprep.subr.bf16.mxu0 0
    %876 = vmatpush1.bf16.msra.mxu0 %v839
    %877 = vmatprep.subr.bf16.mxu0 0
    %878 = vmatpush1.bf16.msra.mxu0 %v840
    %879 = vmatprep.subr.bf16.mxu0 0
    %880 = vmatpush1.bf16.msra.mxu0 %v841
    %881 = vmatprep.subr.bf16.mxu0 0
    %882 = vmatpush1.bf16.msra.mxu0 %v842
    %883 = vmatprep.subr.bf16.mxu0 0
    %884 = vmatpush1.bf16.msra.mxu0 %v843
    %885 = vmatprep.subr.bf16.mxu0 0
    %886 = vmatpush1.bf16.msra.mxu0 %v844
    %887 = vmatprep.subr.bf16.mxu0 0
    %888 = vmatpush1.bf16.msra.mxu0 %v845
    %889 = vmatprep.subr.bf16.mxu0 0
    %890 = vmatpush1.bf16.msra.mxu0 %v846
    %891 = vmatprep.subr.bf16.mxu0 0
    %892 = vmatpush1.bf16.msra.mxu0 %v847
    %893 = vmatprep.subr.bf16.mxu0 0
    %894 = vmatpush1.bf16.msra.mxu0 %v848
    %895 = vmatprep.subr.bf16.mxu0 0
    %896 = vmatpush1.bf16.msra.mxu0 %v849
    %897 = vmatprep.subr.bf16.mxu0 0
    %898 = vmatpush1.bf16.msra.mxu0 %v850
    %899 = vmatprep.mubr.bf16.mxu0 %v729
    %900 = vmatmul.mubr.bf16.gmra.mrb[0].mxu0 %v728
    %v901 = vpop.f32.mrb[0].mxu0
    %v902 = vadd.f32 %v769, %v901
    %v903 = vpop.f32.mrb[0].mxu0
    %v904 = vpop.f32.mrb[0].mxu0
    %v905 = vadd.f32 %v769, %v904
    %v906 = vpop.f32.mrb[0].mxu0
    %907 = vmatprep.mubr.bf16.mxu0 %v731
    %908 = vmatmul.mubr.bf16.gmra.mrb[0].mxu0 %v730
    %v909 = vpop.f32.mrb[0].mxu0
    %v910 = vadd.f32 %v769, %v909
    %v911 = vpop.f32.mrb[0].mxu0
    %v912 = vpop.f32.mrb[0].mxu0
    %v913 = vadd.f32 %v769, %v912
    %v914 = vpop.f32.mrb[0].mxu0
    %915 = vdwg.mxu0
    %v916 = vmax.f32 %v902, 0.0
    %v917 = vmax.f32 %v905, 0.0
    %v918 = vmax.f32 %v910, 0.0
    %v919 = vmax.f32 %v913, 0.0
    %v920 = vrot.slane %v916, 6
    %v921 = vrot.slane %v917, 6
    %v922 = vrot.slane %v918, 6
    %v923 = vrot.slane %v919, 6
    %v924 = vsel %vm715, %v922, %v923
    %v925 = vsel %vm715, %v921, %v922
    %v926 = vsel %vm715, %v920, %v921
    %v927 = vsel %vm715, %v923, %v920
    %v928 = vsel %vm720, %v927, 0.0
    %v929 = vsel %vm721, %v926, 0.0
    %v930 = vsel %vm722, %v925, 0.0
    %v931 = vsel %vm723, %v924, 0.0
    %v932 = vpack.c.bf16 %v917, %v916
    %v933 = vpack.c.bf16 %v929, %v928
    %v934 = vpack.c.bf16 %v919, %v918
    %v935 = vpack.c.bf16 %v931, %v930
    %v936 = vld [vmem:[#allocation7] sm:$0xf]
    %v937 = vld [vmem:[#allocation7 + $0x4] sm:$0xf]
    %v938 = vld [vmem:[#allocation7 + $0x8] sm:$0xf]
    %v939 = vld [vmem:[#allocation7 + $0xc] sm:$0xf]
    %v940 = vld [vmem:[#allocation7 + $0x10] sm:$0xf]
    %v941 = vld [vmem:[#allocation7 + $0x14] sm:$0xf]
    %v942 = vld [vmem:[#allocation7 + $0x18] sm:$0xf]
    %v943 = vld [vmem:[#allocation7 + $0x1c] sm:$0xf]
    %v944 = vld [vmem:[#allocation7 + $0x20] sm:$0xf]
    %v945 = vld [vmem:[#allocation7 + $0x24] sm:$0xf]
    %v946 = vld [vmem:[#allocation7 + $0x28] sm:$0xf]
    %v947 = vld [vmem:[#allocation7 + $0x2c] sm:$0xf]
    %v948 = vld [vmem:[#allocation7 + $0x30] sm:$0xf]
    %v949 = vld [vmem:[#allocation7 + $0x34] sm:$0xf]
    %v950 = vld [vmem:[#allocation7 + $0x38] sm:$0xf]
    %v951 = vld [vmem:[#allocation7 + $0x3c] sm:$0xf]
    %v952 = vld [vmem:[#allocation7 + $0x40] sm:$0xf]
    %v953 = vld [vmem:[#allocation7 + $0x44] sm:$0xf]
    %v954 = vld [vmem:[#allocation7 + $0x48] sm:$0xf]
    %v955 = vld [vmem:[#allocation7 + $0x4c] sm:$0xf]
    %v956 = vld [vmem:[#allocation7 + $0x50] sm:$0xf]
    %v957 = vld [vmem:[#allocation7 + $0x54] sm:$0xf]
    %v958 = vld [vmem:[#allocation7 + $0x58] sm:$0xf]
    %v959 = vld [vmem:[#allocation7 + $0x5c] sm:$0xf]
    %v960 = vld [vmem:[#allocation7 + $0x60] sm:$0xf]
    %v961 = vld [vmem:[#allocation7 + $0x64] sm:$0xf]
    %v962 = vld [vmem:[#allocation7 + $0x68] sm:$0xf]
    %v963 = vld [vmem:[#allocation7 + $0x6c] sm:$0xf]
    %v964 = vld [vmem:[#allocation7 + $0x70] sm:$0xf]
    %v965 = vld [vmem:[#allocation7 + $0x74] sm:$0xf]
    %v966 = vld [vmem:[#allocation7 + $0x78] sm:$0xf]
    %v967 = vld [vmem:[#allocation7 + $0x7c] sm:$0xf]
    %v968 = vld [vmem:[%s10] sm:$0x1]
    %v970 = vlaneseq
    %v971 = vshrl.u32 %v970, 7
    %v972 = vsub.s32 0, %v971
    %v973 = vrot.slane %v968, %v972
    %v1007 = vunpack.c.l.b16 %v936
    %v1008 = vunpack.c.l.b16 %v937
    %v1009 = vunpack.c.l.b16 %v938
    %v1010 = vunpack.c.l.b16 %v939
    %v1011 = vunpack.c.l.b16 %v940
    %v1012 = vunpack.c.l.b16 %v941
    %v1013 = vunpack.c.l.b16 %v942
    %v1014 = vunpack.c.l.b16 %v943
    %v1015 = vunpack.c.l.b16 %v944
    %v1016 = vunpack.c.l.b16 %v945
    %v1017 = vunpack.c.l.b16 %v946
    %v1018 = vunpack.c.l.b16 %v947
    %v1019 = vunpack.c.l.b16 %v948
    %v1020 = vunpack.c.l.b16 %v949
    %v1021 = vunpack.c.l.b16 %v950
    %v1022 = vunpack.c.l.b16 %v951
    %v1023 = vunpack.c.l.b16 %v952
    %v1024 = vunpack.c.l.b16 %v953
    %v1025 = vunpack.c.l.b16 %v954
    %v1026 = vunpack.c.l.b16 %v955
    %v1027 = vunpack.c.l.b16 %v956
    %v1028 = vunpack.c.l.b16 %v957
    %v1029 = vunpack.c.l.b16 %v958
    %v1030 = vunpack.c.l.b16 %v959
    %v1031 = vunpack.c.l.b16 %v960
    %v1032 = vunpack.c.l.b16 %v961
    %v1033 = vunpack.c.l.b16 %v962
    %v1034 = vunpack.c.l.b16 %v963
    %v1035 = vunpack.c.l.b16 %v964
    %v1036 = vunpack.c.l.b16 %v965
    %v1037 = vunpack.c.l.b16 %v966
    %v1038 = vunpack.c.l.b16 %v967
    %v1039 = vpack.c.b16 %v1008, %v1007
    %v1040 = vpack.c.b16 %v1010, %v1009
    %v1041 = vpack.c.b16 %v1012, %v1011
    %v1042 = vpack.c.b16 %v1014, %v1013
    %v1043 = vpack.c.b16 %v1016, %v1015
    %v1044 = vpack.c.b16 %v1018, %v1017
    %v1045 = vpack.c.b16 %v1020, %v1019
    %v1046 = vpack.c.b16 %v1022, %v1021
    %v1047 = vpack.c.b16 %v1024, %v1023
    %v1048 = vpack.c.b16 %v1026, %v1025
    %v1049 = vpack.c.b16 %v1028, %v1027
    %v1050 = vpack.c.b16 %v1030, %v1029
    %v1051 = vpack.c.b16 %v1032, %v1031
    %v1052 = vpack.c.b16 %v1034, %v1033
    %v1053 = vpack.c.b16 %v1036, %v1035
    %v1054 = vpack.c.b16 %v1038, %v1037
    %1071 = vmatprep.subr.bf16.mxu0 0
    %1072 = vmatpush1.bf16.msra.mxu0 %v1039
    %1073 = vmatprep.subr.bf16.mxu0 0
    %1074 = vmatpush1.bf16.msra.mxu0 %v1040
    %1075 = vmatprep.subr.bf16.mxu0 0
    %1076 = vmatpush1.bf16.msra.mxu0 %v1041
    %1077 = vmatprep.subr.bf16.mxu0 0
    %1078 = vmatpush1.bf16.msra.mxu0 %v1042
    %1079 = vmatprep.subr.bf16.mxu0 0
    %1080 = vmatpush1.bf16.msra.mxu0 %v1043
    %1081 = vmatprep.subr.bf16.mxu0 0
    %1082 = vmatpush1.bf16.msra.mxu0 %v1044
    %1083 = vmatprep.subr.bf16.mxu0 0
    %1084 = vmatpush1.bf16.msra.mxu0 %v1045
    %1085 = vmatprep.subr.bf16.mxu0 0
    %1086 = vmatpush1.bf16.msra.mxu0 %v1046
    %1087 = vmatprep.subr.bf16.mxu0 0
    %1088 = vmatpush1.bf16.msra.mxu0 %v1047
    %1089 = vmatprep.subr.bf16.mxu0 0
    %1090 = vmatpush1.bf16.msra.mxu0 %v1048
    %1091 = vmatprep.subr.bf16.mxu0 0
    %1092 = vmatpush1.bf16.msra.mxu0 %v1049
    %1093 = vmatprep.subr.bf16.mxu0 0
    %1094 = vmatpush1.bf16.msra.mxu0 %v1050
    %1095 = vmatprep.subr.bf16.mxu0 0
    %1096 = vmatpush1.bf16.msra.mxu0 %v1051
    %1097 = vmatprep.subr.bf16.mxu0 0
    %1098 = vmatpush1.bf16.msra.mxu0 %v1052
    %1099 = vmatprep.subr.bf16.mxu0 0
    %1100 = vmatpush1.bf16.msra.mxu0 %v1053
    %1101 = vmatprep.subr.bf16.mxu0 0
    %1102 = vmatpush1.bf16.msra.mxu0 %v1054
    %1103 = vmatprep.mubr.bf16.mxu0 %v933
    %1104 = vmatmul.mubr.bf16.gmra.mrb[0].mxu0 %v932
    %v1105 = vpop.f32.mrb[0].mxu0
    %v1106 = vadd.f32 %v973, %v1105
    %v1107 = vpop.f32.mrb[0].mxu0
    %v1108 = vpop.f32.mrb[0].mxu0
    %v1109 = vadd.f32 %v973, %v1108
    %v1110 = vpop.f32.mrb[0].mxu0
    %1111 = vmatprep.mubr.bf16.mxu0 %v935
    %1112 = vmatmul.mubr.bf16.gmra.mrb[0].mxu0 %v934
    %v1113 = vpop.f32.mrb[0].mxu0
    %v1114 = vadd.f32 %v973, %v1113
    %v1115 = vpop.f32.mrb[0].mxu0
    %v1116 = vpop.f32.mrb[0].mxu0
    %v1117 = vadd.f32 %v973, %v1116
    %v1118 = vpop.f32.mrb[0].mxu0
    %1119 = vdwg.mxu0
    %v1120 = vmax.f32 %v1106, 0.0
    %v1121 = vmax.f32 %v1109, 0.0
    %v1122 = vmax.f32 %v1114, 0.0
    %v1123 = vmax.f32 %v1117, 0.0
    %v1124 = vadd.f32 %v1120, %v707
    %v1125 = vadd.f32 %v1121, %v708
    %v1126 = vadd.f32 %v1122, %v709
    %v1127 = vadd.f32 %v1123, %v710
    %v1128 = vmax.f32 %v1124, 0.0
    %v1129 = vmax.f32 %v1125, 0.0
    %v1130 = vmax.f32 %v1126, 0.0
    %v1131 = vmax.f32 %v1127, 0.0
    %v1132 = vpack.c.bf16 %v1129, %v1128
    %v1133 = vpack.c.bf16 %v1131, %v1130
    %v1134 = vld [vmem:[#allocation9] sm:$0xf]
    %v1135 = vld [vmem:[#allocation9 + $0x4] sm:$0xf]
    %v1136 = vld [vmem:[#allocation9 + $0x8] sm:$0xf]
    %v1137 = vld [vmem:[#allocation9 + $0xc] sm:$0xf]
    %v1138 = vld [vmem:[#allocation9 + $0x10] sm:$0xf]
    %v1139 = vld [vmem:[#allocation9 + $0x14] sm:$0xf]
    %v1140 = vld [vmem:[#allocation9 + $0x18] sm:$0xf]
    %v1141 = vld [vmem:[#allocation9 + $0x1c] sm:$0xf]
    %v1142 = vld [vmem:[#allocation9 + $0x20] sm:$0xf]
    %v1143 = vld [vmem:[#allocation9 + $0x24] sm:$0xf]
    %v1144 = vld [vmem:[#allocation9 + $0x28] sm:$0xf]
    %v1145 = vld [vmem:[#allocation9 + $0x2c] sm:$0xf]
    %v1146 = vld [vmem:[#allocation9 + $0x30] sm:$0xf]
    %v1147 = vld [vmem:[#allocation9 + $0x34] sm:$0xf]
    %v1148 = vld [vmem:[#allocation9 + $0x38] sm:$0xf]
    %v1149 = vld [vmem:[#allocation9 + $0x3c] sm:$0xf]
    %v1150 = vld [vmem:[%s12] sm:$0x1]
    %v1152 = vlaneseq
    %v1153 = vshrl.u32 %v1152, 7
    %v1154 = vsub.s32 0, %v1153
    %v1155 = vrot.slane %v1150, %v1154
    %v1173 = vunpack.c.l.b16 %v1134
    %v1174 = vunpack.c.l.b16 %v1135
    %v1175 = vunpack.c.l.b16 %v1136
    %v1176 = vunpack.c.l.b16 %v1137
    %v1177 = vunpack.c.l.b16 %v1138
    %v1178 = vunpack.c.l.b16 %v1139
    %v1179 = vunpack.c.l.b16 %v1140
    %v1180 = vunpack.c.l.b16 %v1141
    %v1181 = vunpack.c.l.b16 %v1142
    %v1182 = vunpack.c.l.b16 %v1143
    %v1183 = vunpack.c.l.b16 %v1144
    %v1184 = vunpack.c.l.b16 %v1145
    %v1185 = vunpack.c.l.b16 %v1146
    %v1186 = vunpack.c.l.b16 %v1147
    %v1187 = vunpack.c.l.b16 %v1148
    %v1188 = vunpack.c.l.b16 %v1149
    %v1189 = vpack.c.b16 %v1174, %v1173
    %v1190 = vpack.c.b16 %v1176, %v1175
    %v1191 = vpack.c.b16 %v1178, %v1177
    %v1192 = vpack.c.b16 %v1180, %v1179
    %v1193 = vpack.c.b16 %v1182, %v1181
    %v1194 = vpack.c.b16 %v1184, %v1183
    %v1195 = vpack.c.b16 %v1186, %v1185
    %v1196 = vpack.c.b16 %v1188, %v1187
    %1205 = vmatprep.subr.bf16.mxu0 0
    %1206 = vmatpush1.bf16.msra.mxu0 %v1189
    %1207 = vmatprep.subr.bf16.mxu0 0
    %1208 = vmatpush1.bf16.msra.mxu0 %v1190
    %1209 = vmatprep.subr.bf16.mxu0 0
    %1210 = vmatpush1.bf16.msra.mxu0 %v1191
    %1211 = vmatprep.subr.bf16.mxu0 0
    %1212 = vmatpush1.bf16.msra.mxu0 %v1192
    %1213 = vmatprep.subr.bf16.mxu0 0
    %1214 = vmatpush1.bf16.msra.mxu0 %v1193
    %1215 = vmatprep.subr.bf16.mxu0 0
    %1216 = vmatpush1.bf16.msra.mxu0 %v1194
    %1217 = vmatprep.subr.bf16.mxu0 0
    %1218 = vmatpush1.bf16.msra.mxu0 %v1195
    %1219 = vmatprep.subr.bf16.mxu0 0
    %1220 = vmatpush1.bf16.msra.mxu0 %v1196
    %1221 = vmatprep.subr.bf16.mxu0 0
    %1222 = vmatpush1.bf16.msra.mxu0 0
    %1223 = vmatprep.subr.bf16.mxu0 0
    %1224 = vmatpush1.bf16.msra.mxu0 0
    %1225 = vmatprep.subr.bf16.mxu0 0
    %1226 = vmatpush1.bf16.msra.mxu0 0
    %1227 = vmatprep.subr.bf16.mxu0 0
    %1228 = vmatpush1.bf16.msra.mxu0 0
    %1229 = vmatprep.subr.bf16.mxu0 0
    %1230 = vmatpush1.bf16.msra.mxu0 0
    %1231 = vmatprep.subr.bf16.mxu0 0
    %1232 = vmatpush1.bf16.msra.mxu0 0
    %1233 = vmatprep.subr.bf16.mxu0 0
    %1234 = vmatpush1.bf16.msra.mxu0 0
    %1235 = vmatprep.subr.bf16.mxu0 0
    %1236 = vmatpush1.bf16.msra.mxu0 0
    %1237 = vmatprep.mubr.bf16.mxu0 0
    %1238 = vmatmul.mubr.bf16.gmra.mrb[0].mxu0 %v1132
    %v1239 = vpop.f32.mrb[0].mxu0
    %v1240 = vadd.f32 %v1155, %v1239
    %v1241 = vpop.f32.mrb[0].mxu0
    %v1242 = vpop.f32.mrb[0].mxu0
    %v1243 = vadd.f32 %v1155, %v1242
    %v1244 = vpop.f32.mrb[0].mxu0
    %1245 = vmatprep.mubr.bf16.mxu0 0
    %1246 = vmatmul.mubr.bf16.gmra.mrb[0].mxu0 %v1133
    %v1247 = vpop.f32.mrb[0].mxu0
    %v1248 = vadd.f32 %v1155, %v1247
    %v1249 = vpop.f32.mrb[0].mxu0
    %v1250 = vpop.f32.mrb[0].mxu0
    %v1251 = vadd.f32 %v1155, %v1250
    %v1252 = vpop.f32.mrb[0].mxu0
    %1253 = vdwg.mxu0
    %v1254 = vtanh.pop %v1240
    %v1255 = vtanh.pop %v1243
    %v1256 = vtanh.pop %v1248
    %v1257 = vtanh.pop %v1251
    %1258 = vst [vmem:[%s13] sm:$0xff] %v1254
    %1259 = vst [vmem:[%s13 + $0x8] sm:$0xff] %v1255
    %1260 = vst [vmem:[%s13 + $0x10] sm:$0xff] %v1256
    %1261 = vst [vmem:[%s13 + $0x18] sm:$0xff] %v1257
    // Predicated region
    $region74: #{generator_forward.1} parent=1 // pred_check
      _
    $region75: #{generator_forward.1} parent=1 // pred_check_branch
      %1263 = sbr.rel (0) target = $region77
    $region76: #{generator_forward.1} parent=1 // pred_region
      _
    $region77: #{generator_forward.1} parent=1 // pred_fallthru
      _
    // Predicated region
    $region78: #{generator_forward.1} parent=1 // pred_check
      _
    $region79: #{generator_forward.1} parent=1 // pred_check_branch
      %1265 = sbr.rel (0) target = $region81
    $region80: #{generator_forward.1} parent=1 // pred_region
      _
    $region81: #{generator_forward.1} parent=1 // pred_fallthru
      _
    %1266 = vsyncpa [#allocation3], 1
    %1267 = vsyncpa [#allocation5], 1
    %1268 = vsyncpa [#allocation8], 1

</llo_original>
